<compile_context>
chip_gen: v6e
topology: v6e:2x2x1
jax: 0.10.0
libtpu: 0.0.40
codegen_flags: <defaults>
</compile_context>

<pallas_src>
import jax
import jax.numpy as jnp
from jax.experimental import pallas as pl
from jax.experimental.pallas import tpu as pltpu

IN_DIM = 784
H1_RAW, H2_RAW, OUT_DIM = 200, 100, 10
H1_PAD, H2_PAD = 256, 128          # 128-multiple padded hidden widths


def _round_up(n, m):
    return ((n + m - 1) // m) * m


def mlp_kernel(x_ref, w1_ref, b1_ref, w2_ref, b2_ref, w3_ref, b3_ref, o_ref):
    # Layer 1: (tb,784)bf16 @ (784,256)bf16 -> f32 acc, +bias, relu, -> bf16
    h1 = jnp.dot(x_ref[...], w1_ref[...], preferred_element_type=jnp.float32)
    h1 = jnp.maximum(h1 + b1_ref[...], 0.0).astype(jnp.bfloat16)
    # Layer 2: (tb,256)bf16 @ (256,128)bf16 -> f32 acc, +bias, relu, -> bf16
    h2 = jnp.dot(h1, w2_ref[...], preferred_element_type=jnp.float32)
    h2 = jnp.maximum(h2 + b2_ref[...], 0.0).astype(jnp.bfloat16)
    # Layer 3: (tb,128)bf16 @ (128,10)bf16 -> f32 acc, +bias (no activation)
    h3 = jnp.dot(h2, w3_ref[...], preferred_element_type=jnp.float32)
    o_ref[...] = (h3 + b3_ref[...]).astype(o_ref.dtype)


def prepare_params(params):
    """Pad hidden dims to 128 multiples and cast weights to bf16 (biases stay f32)."""
    w1, b1, w2, b2, w3, b3 = params

    def pad_cols(a, n):
        return jnp.pad(a, ((0, 0), (0, n - a.shape[1])))

    def pad_rows(a, n):
        return jnp.pad(a, ((0, n - a.shape[0]), (0, 0)))

    w1p = pad_cols(w1, H1_PAD).astype(jnp.bfloat16)              # (784, 256)
    b1p = pad_cols(b1, H1_PAD).astype(jnp.float32)               # (1, 256)
    w2p = pad_cols(pad_rows(w2, H1_PAD), H2_PAD).astype(jnp.bfloat16)  # (256, 128)
    b2p = pad_cols(b2, H2_PAD).astype(jnp.float32)               # (1, 128)
    w3p = pad_rows(w3, H2_PAD).astype(jnp.bfloat16)              # (128, 10)
    b3p = b3.astype(jnp.float32)                                 # (1, 10)
    return (w1p, b1p, w2p, b2p, w3p, b3p)


def mlp_forward(x, prepared_params, tile_b=512):
    """x: (B, 1, 28, 28) or (B, 784) float. Returns (B, 10) float32."""
    w1, b1, w2, b2, w3, b3 = prepared_params

    x2d = x.reshape(-1, IN_DIM).astype(jnp.bfloat16)   # same as torch x.view(-1, 784)
    B = x2d.shape[0]

    # Tile the batch; pad B up to a multiple of the tile (zeros are sliced off after).
    tb = min(tile_b, _round_up(B, 16))
    B_pad = _round_up(B, tb)
    if B_pad != B:
        x2d = jnp.pad(x2d, ((0, B_pad - B), (0, 0)))
    grid = (B_pad // tb,)

    # Weights/biases: constant block index -> loaded once, resident across the grid.
    resident = lambda arr: pl.BlockSpec(arr.shape, lambda i: (0, 0))

    out = pl.pallas_call(
        mlp_kernel,
        out_shape=jax.ShapeDtypeStruct((B_pad, OUT_DIM), jnp.float32),
        grid=grid,
        in_specs=[
            pl.BlockSpec((tb, IN_DIM), lambda i: (i, 0)),   # x: streamed per tile
            resident(w1), resident(b1),
            resident(w2), resident(b2),
            resident(w3), resident(b3),
        ],
        out_specs=pl.BlockSpec((tb, OUT_DIM), lambda i: (i, 0)),
        compiler_params=pltpu.CompilerParams(
            dimension_semantics=("parallel",),   # batch axis: megacore-shardable (v7x)
        ),
    )(x2d, w1, b1, w2, b2, w3, b3)

    return out[:B]


def init_params(key):
    """Deterministic init; shapes follow nn.Linear(784,200)/(200,100)/(100,10).
    Weights stored transposed as (in, out); biases as (1, out)."""
    ks = jax.random.split(key, 6)

    def linear(kw, kb, fan_in, fan_out):
        bound = 1.0 / jnp.sqrt(fan_in)
        w = jax.random.uniform(kw, (fan_in, fan_out), jnp.float32, -bound, bound)
        b = jax.random.uniform(kb, (1, fan_out), jnp.float32, -bound, bound)
        return w, b

    w1, b1 = linear(ks[0], ks[1], IN_DIM, H1_RAW)
    w2, b2 = linear(ks[2], ks[3], H1_RAW, H2_RAW)
    w3, b3 = linear(ks[4], ks[5], H2_RAW, OUT_DIM)
    return (w1, b1, w2, b2, w3, b3)


def mlp_reference(x, params):
    """Same mixed precision as the kernel (bf16 inputs/weights, f32 accumulate),
    computed on unpadded params — verifies both the kernel and the zero padding."""
    w1, b1, w2, b2, w3, b3 = params
    x2d = x.reshape(-1, IN_DIM).astype(jnp.bfloat16)
    h1 = jnp.dot(x2d, w1.astype(jnp.bfloat16), preferred_element_type=jnp.float32) + b1
    h1 = jnp.maximum(h1, 0.0).astype(jnp.bfloat16)
    h2 = jnp.dot(h1, w2.astype(jnp.bfloat16), preferred_element_type=jnp.float32) + b2
    h2 = jnp.maximum(h2, 0.0).astype(jnp.bfloat16)
    return jnp.dot(h2, w3.astype(jnp.bfloat16), preferred_element_type=jnp.float32) + b3


if __name__ == "__main__":
    key = jax.random.PRNGKey(0)
    k_x, k_x2, k_p = jax.random.split(key, 3)

    params = init_params(k_p)
    prepared = prepare_params(params)

    # Small MNIST-shaped batch (B, 1, 28, 28) — single grid step.
    x = jax.random.normal(k_x, (2, 1, 28, 28), jnp.float32)
    out = jax.block_until_ready(mlp_forward(x, prepared))
    ref = mlp_reference(x, params)
    assert out.shape == (2, 10)
    assert jnp.allclose(out, ref.astype(jnp.float32), atol=1e-3, rtol=1e-3)

    # Ragged batch with a small tile to exercise multi-step grid + tail padding.
    x2 = jax.random.normal(k_x2, (300, IN_DIM), jnp.float32)
    out2 = jax.block_until_ready(mlp_forward(x2, prepared, tile_b=128))
    ref2 = mlp_reference(x2, params)
    assert out2.shape == (300, 10)
    assert jnp.allclose(out2, ref2.astype(jnp.float32), atol=1e-3, rtol=1e-3)

    print("KERNEL_OK")
</pallas_src>

<mosaic_0001>
module attributes {stable_mosaic.version = 11 : i64} {
  func.func @mlp_kernel(%arg0: i32, %arg1: memref<16x784xbf16, #tpu.memory_space<vmem>>, %arg2: memref<784x256xbf16, #tpu.memory_space<vmem>>, %arg3: memref<1x256xf32, #tpu.memory_space<vmem>>, %arg4: memref<256x128xbf16, #tpu.memory_space<vmem>>, %arg5: memref<1x128xf32, #tpu.memory_space<vmem>>, %arg6: memref<128x10xbf16, #tpu.memory_space<vmem>>, %arg7: memref<1x10xf32, #tpu.memory_space<vmem>>, %arg8: memref<16x10xf32, #tpu.memory_space<vmem>>) attributes {dimension_semantics = [#tpu.dimension_semantics<parallel>], iteration_bounds = array<i64: 1>, scalar_prefetch = 0 : i64, scratch_operands = 0 : i64, tpu.core_type = #tpu.core_type<tc>, window_params = [{transform_indices = @transform_0, window_bounds = array<i64: 16, 784>}, {pipeline_mode = #tpu.pipeline_mode<synchronous>, transform_indices = @transform_1, window_bounds = array<i64: 784, 256>}, {pipeline_mode = #tpu.pipeline_mode<synchronous>, transform_indices = @transform_2, window_bounds = array<i64: 1, 256>}, {pipeline_mode = #tpu.pipeline_mode<synchronous>, transform_indices = @transform_3, window_bounds = array<i64: 256, 128>}, {pipeline_mode = #tpu.pipeline_mode<synchronous>, transform_indices = @transform_4, window_bounds = array<i64: 1, 128>}, {pipeline_mode = #tpu.pipeline_mode<synchronous>, transform_indices = @transform_5, window_bounds = array<i64: 128, 10>}, {pipeline_mode = #tpu.pipeline_mode<synchronous>, transform_indices = @transform_6, window_bounds = array<i64: 1, 10>}, {transform_indices = @transform_7, window_bounds = array<i64: 16, 10>}]} {
    %c0 = arith.constant 0 : index
    %c0_0 = arith.constant 0 : index
    %0 = vector.load %arg1[%c0, %c0_0] : memref<16x784xbf16, #tpu.memory_space<vmem>>, vector<16x784xbf16>
    %c0_1 = arith.constant 0 : index
    %c0_2 = arith.constant 0 : index
    %1 = vector.load %arg2[%c0_1, %c0_2] : memref<784x256xbf16, #tpu.memory_space<vmem>>, vector<784x256xbf16>
    %cst = arith.constant dense<0.000000e+00> : vector<16x256xf32>
    %2 = tpu.matmul %0, %1, %cst {dimension_numbers = #tpu.dot_dimension_numbers<[1], [0], [0], [1], [0, 0, 1, 1], [], []>} : vector<16x784xbf16>, vector<784x256xbf16>, vector<16x256xf32> -> vector<16x256xf32>
    %c0_3 = arith.constant 0 : index
    %c0_4 = arith.constant 0 : index
    %3 = vector.load %arg3[%c0_3, %c0_4] : memref<1x256xf32, #tpu.memory_space<vmem>>, vector<1x256xf32>
    %4 = vector.broadcast %3 : vector<1x256xf32> to vector<16x256xf32>
    %5 = arith.addf %2, %4 : vector<16x256xf32>
    %cst_5 = arith.constant 0.000000e+00 : f32
    %6 = vector.broadcast %cst_5 : f32 to vector<16x256xf32>
    %7 = arith.maximumf %5, %6 : vector<16x256xf32>
    %8 = arith.truncf %7 : vector<16x256xf32> to vector<16x256xbf16>
    %c0_6 = arith.constant 0 : index
    %c0_7 = arith.constant 0 : index
    %9 = vector.load %arg4[%c0_6, %c0_7] : memref<256x128xbf16, #tpu.memory_space<vmem>>, vector<256x128xbf16>
    %cst_8 = arith.constant dense<0.000000e+00> : vector<16x128xf32>
    %10 = tpu.matmul %8, %9, %cst_8 {dimension_numbers = #tpu.dot_dimension_numbers<[1], [0], [0], [1], [0, 0, 1, 1], [], []>} : vector<16x256xbf16>, vector<256x128xbf16>, vector<16x128xf32> -> vector<16x128xf32>
    %c0_9 = arith.constant 0 : index
    %c0_10 = arith.constant 0 : index
    %11 = vector.load %arg5[%c0_9, %c0_10] : memref<1x128xf32, #tpu.memory_space<vmem>>, vector<1x128xf32>
    %12 = vector.broadcast %11 : vector<1x128xf32> to vector<16x128xf32>
    %13 = arith.addf %10, %12 : vector<16x128xf32>
    %cst_11 = arith.constant 0.000000e+00 : f32
    %14 = vector.broadcast %cst_11 : f32 to vector<16x128xf32>
    %15 = arith.maximumf %13, %14 : vector<16x128xf32>
    %16 = arith.truncf %15 : vector<16x128xf32> to vector<16x128xbf16>
    %c0_12 = arith.constant 0 : index
    %c0_13 = arith.constant 0 : index
    %17 = vector.load %arg6[%c0_12, %c0_13] : memref<128x10xbf16, #tpu.memory_space<vmem>>, vector<128x10xbf16>
    %cst_14 = arith.constant dense<0.000000e+00> : vector<16x10xf32>
    %18 = tpu.matmul %16, %17, %cst_14 {dimension_numbers = #tpu.dot_dimension_numbers<[1], [0], [0], [1], [0, 0, 1, 1], [], []>} : vector<16x128xbf16>, vector<128x10xbf16>, vector<16x10xf32> -> vector<16x10xf32>
    %c0_15 = arith.constant 0 : index
    %c0_16 = arith.constant 0 : index
    %19 = vector.load %arg7[%c0_15, %c0_16] : memref<1x10xf32, #tpu.memory_space<vmem>>, vector<1x10xf32>
    %20 = vector.broadcast %19 : vector<1x10xf32> to vector<16x10xf32>
    %21 = arith.addf %18, %20 : vector<16x10xf32>
    %c0_17 = arith.constant 0 : index
    %c0_18 = arith.constant 0 : index
    %22 = vector.load %arg8[%c0_17, %c0_18] : memref<16x10xf32, #tpu.memory_space<vmem>>, vector<16x10xf32>
    tpu.vector_store %arg8[%c0_17, %c0_18], %21 {strides = array<i32>} : memref<16x10xf32, #tpu.memory_space<vmem>>, vector<16x10xf32>,
    return
  }
  func.func @transform_0(%arg0: i32) -> (i32, i32) {
    %c0_i32 = arith.constant 0 : i32
    %c0_i32_0 = arith.constant 0 : i32
    return %arg0, %c0_i32 : i32, i32
  }
  func.func @transform_1(%arg0: i32) -> (i32, i32) {
    %c0_i32 = arith.constant 0 : i32
    %c0_i32_0 = arith.constant 0 : i32
    %c0_i32_1 = arith.constant 0 : i32
    return %c0_i32, %c0_i32_0 : i32, i32
  }
  func.func @transform_2(%arg0: i32) -> (i32, i32) {
    %c0_i32 = arith.constant 0 : i32
    %c0_i32_0 = arith.constant 0 : i32
    %c0_i32_1 = arith.constant 0 : i32
    return %c0_i32, %c0_i32_0 : i32, i32
  }
  func.func @transform_3(%arg0: i32) -> (i32, i32) {
    %c0_i32 = arith.constant 0 : i32
    %c0_i32_0 = arith.constant 0 : i32
    %c0_i32_1 = arith.constant 0 : i32
    return %c0_i32, %c0_i32_0 : i32, i32
  }
  func.func @transform_4(%arg0: i32) -> (i32, i32) {
    %c0_i32 = arith.constant 0 : i32
    %c0_i32_0 = arith.constant 0 : i32
    %c0_i32_1 = arith.constant 0 : i32
    return %c0_i32, %c0_i32_0 : i32, i32
  }
  func.func @transform_5(%arg0: i32) -> (i32, i32) {
    %c0_i32 = arith.constant 0 : i32
    %c0_i32_0 = arith.constant 0 : i32
    %c0_i32_1 = arith.constant 0 : i32
    return %c0_i32, %c0_i32_0 : i32, i32
  }
  func.func @transform_6(%arg0: i32) -> (i32, i32) {
    %c0_i32 = arith.constant 0 : i32
    %c0_i32_0 = arith.constant 0 : i32
    %c0_i32_1 = arith.constant 0 : i32
    return %c0_i32, %c0_i32_0 : i32, i32
  }
  func.func @transform_7(%arg0: i32) -> (i32, i32) {
    %c0_i32 = arith.constant 0 : i32
    %c0_i32_0 = arith.constant 0 : i32
    return %arg0, %c0_i32 : i32, i32
  }
}

</mosaic_0001>

<llo_original>
// kernel: tpu_custom_call.1
$region0: #{tpu_custom_call.1}
  #allocation0 [shape = 'u32[]', space=smem, size = 0x4, offset = 0x4, fixed_abs, tag = 'smem constant byte address 0x4 - core index']
  #allocation1 [shape = 'u32[144,128]{1,0:T(1,128)}', space=vmem, size = 0x12000, scoped, tag = 'internal scratch']
  %s0 = inlined_call_operand.vmem [shape: bf16[16,784], index: 0, kind: input, shape index: {}]
  %s1 = inlined_call_operand.hbm [shape: bf16[784,256], index: 1, kind: input, shape index: {}]
  %s2 = inlined_call_operand.vmem [shape: f32[1,256], index: 2, kind: input, shape index: {}]
  %s3 = inlined_call_operand.hbm [shape: bf16[256,128], index: 3, kind: input, shape index: {}]
  %s4 = inlined_call_operand.vmem [shape: f32[1,128], index: 4, kind: input, shape index: {}]
  %s5 = inlined_call_operand.vmem [shape: bf16[128,10], index: 5, kind: input, shape index: {}]
  %s6 = inlined_call_operand.vmem [shape: f32[1,10], index: 6, kind: input, shape index: {}]
  %s7 = inlined_call_operand.hbm [shape: f32[16,10], index: 7, kind: output, shape index: {}]
  %s8 = sld [smem:[#allocation0]]
  $region46: #{tpu_custom_call.1} parent=0
    _
  %s10 = ssub.s32 1, %s8
  %s11 = scalar_select 0, %s10, %s8
  $region1: #{tpu_custom_call.1} parent=0
    #allocation2 [shape = 'u8[401408]{0}', space=vmem, size = 0x62000, scoped, tag = 'input window, operand 1, single buffered']
    #allocation3 [shape = 's32[1]{0}', space=sflag, size = 0x4, scoped, tag = 'scoped memory for tpu_custom_call.1']
    #allocation4 [shape = 's32[1]{0}', space=sflag, size = 0x4, scoped, tag = 'scoped memory for tpu_custom_call.1']
    #allocation5 [shape = 'u8[65536]{0}', space=vmem, size = 0x10000, scoped, tag = 'input window, operand 3, single buffered']
    #allocation6 [shape = 's32[1]{0}', space=sflag, size = 0x4, scoped, tag = 'scoped memory for tpu_custom_call.1']
    #allocation7 [shape = 'u8[8192]{0}', space=vmem, size = 0x2000, scoped, tag = 'output window, operand 0, single buffered']
    %12 = vsyncpa [#allocation3], 0
    %13 = vsyncpa [#allocation6], 0
    %14 = vsyncpa [#allocation4], 0
    // Predicated region
    $region2: #{tpu_custom_call.1} parent=1 // pred_check
      _
    $region3: #{tpu_custom_call.1} parent=1 // pred_check_branch
      %16 = sbr.rel (0) target = $region5
    $region4: #{tpu_custom_call.1} parent=1 // pred_region
      _
    $region5: #{tpu_custom_call.1} parent=1 // pred_fallthru
      _
    // Predicated region
    $region6: #{tpu_custom_call.1} parent=1 // pred_check
      _
    $region7: #{tpu_custom_call.1} parent=1 // pred_check_branch
      %18 = sbr.rel (0) target = $region9
    $region8: #{tpu_custom_call.1} parent=1 // pred_region
      %s20 = ssub.s32 12544, 12544
      %21 = vsyncadd [#allocation3], %s20
      %s22 = sshll.u32 [#allocation2], 4
      %s23 = int_to_ptr.vmem [resolvable:$true] %s22
      %28 = dma.hbm_to_vmem [thread:$0]  %s1, 12544, %s23, [#allocation3], 128, 128, 8
    $region9: #{tpu_custom_call.1} parent=1 // pred_fallthru
      _
    // Predicated region
    $region10: #{tpu_custom_call.1} parent=1 // pred_check
      _
    $region11: #{tpu_custom_call.1} parent=1 // pred_check_branch
      %30 = sbr.rel (0) target = $region13
    $region12: #{tpu_custom_call.1} parent=1 // pred_region
      _
    $region13: #{tpu_custom_call.1} parent=1 // pred_fallthru
      _
    // Predicated region
    $region14: #{tpu_custom_call.1} parent=1 // pred_check
      _
    $region15: #{tpu_custom_call.1} parent=1 // pred_check_branch
      %32 = sbr.rel (0) target = $region17
    $region16: #{tpu_custom_call.1} parent=1 // pred_region
      %s34 = ssub.s32 2048, 2048
      %35 = vsyncadd [#allocation6], %s34
      %s36 = sshll.u32 [#allocation5], 4
      %s37 = int_to_ptr.vmem [resolvable:$true] %s36
      %42 = dma.hbm_to_vmem [thread:$0]  %s3, 2048, %s37, [#allocation6], 64, 64, 4
    $region17: #{tpu_custom_call.1} parent=1 // pred_fallthru
      _
    // Predicated region
    $region18: #{tpu_custom_call.1} parent=1 // pred_check
      _
    $region19: #{tpu_custom_call.1} parent=1 // pred_check_branch
      %44 = sbr.rel (0) target = $region21
    $region20: #{tpu_custom_call.1} parent=1 // pred_region
      _
    $region21: #{tpu_custom_call.1} parent=1 // pred_fallthru
      _
    // Predicated region
    $region22: #{tpu_custom_call.1} parent=1 // pred_check
      _
    $region23: #{tpu_custom_call.1} parent=1 // pred_check_branch
      %46 = sbr.rel (0) target = $region25
    $region24: #{tpu_custom_call.1} parent=1 // pred_region
      _
    $region25: #{tpu_custom_call.1} parent=1 // pred_fallthru
      _
    // Predicated region
    $region26: #{tpu_custom_call.1} parent=1 // pred_check
      _
    $region27: #{tpu_custom_call.1} parent=1 // pred_check_branch
      %48 = sbr.rel (0) target = $region29
    $region28: #{tpu_custom_call.1} parent=1 // pred_region
      _
    $region29: #{tpu_custom_call.1} parent=1 // pred_fallthru
      _
    // Predicated region
    $region30: #{tpu_custom_call.1} parent=1 // pred_check
      _
    $region31: #{tpu_custom_call.1} parent=1 // pred_check_branch
      %50 = sbr.rel (0) target = $region33
    $region32: #{tpu_custom_call.1} parent=1 // pred_region
      %51 = dma.done [#allocation3], 12544
    $region33: #{tpu_custom_call.1} parent=1 // pred_fallthru
      _
    // Predicated region
    $region34: #{tpu_custom_call.1} parent=1 // pred_check
      _
    $region35: #{tpu_custom_call.1} parent=1 // pred_check_branch
      %53 = sbr.rel (0) target = $region37
    $region36: #{tpu_custom_call.1} parent=1 // pred_region
      %54 = dma.done [#allocation6], 2048
    $region37: #{tpu_custom_call.1} parent=1 // pred_fallthru
      _
    %v56 = vld [vmem:[%s0] sm:$0xff]
    %v57 = vld [vmem:[%s0 + $0x8] sm:$0xff]
    %v58 = vld [vmem:[%s0 + $0x10] sm:$0xff]
    %v59 = vld [vmem:[%s0 + $0x18] sm:$0xf]
    %v60 = vld [vmem:[%s0 + $0x1c] sm:$0xff]
    %v61 = vld [vmem:[%s0 + $0x24] sm:$0xff]
    %v62 = vld [vmem:[%s0 + $0x2c] sm:$0xff]
    %v63 = vld [vmem:[%s0 + $0x34] sm:$0xf]
    %v64 = vld [vmem:[#allocation2] sm:$0xff]
    %v65 = vld [vmem:[#allocation2 + $0x8] sm:$0xff]
    %v66 = vld [vmem:[#allocation2 + $0x10] sm:$0xff]
    %v67 = vld [vmem:[#allocation2 + $0x18] sm:$0xff]
    %v68 = vld [vmem:[#allocation2 + $0x20] sm:$0xff]
    %v69 = vld [vmem:[#allocation2 + $0x28] sm:$0xff]
    %v70 = vld [vmem:[#allocation2 + $0x30] sm:$0xff]
    %v71 = vld [vmem:[#allocation2 + $0x38] sm:$0xff]
    %v72 = vld [vmem:[#allocation2 + $0x40] sm:$0xff]
    %v73 = vld [vmem:[#allocation2 + $0x48] sm:$0xff]
    %v74 = vld [vmem:[#allocation2 + $0x50] sm:$0xff]
    %v75 = vld [vmem:[#allocation2 + $0x58] sm:$0xff]
    %v76 = vld [vmem:[#allocation2 + $0x60] sm:$0xff]
    %v77 = vld [vmem:[#allocation2 + $0x68] sm:$0xff]
    %v78 = vld [vmem:[#allocation2 + $0x70] sm:$0xff]
    %v79 = vld [vmem:[#allocation2 + $0x78] sm:$0xff]
    %v80 = vld [vmem:[#allocation2 + $0x80] sm:$0xff]
    %v81 = vld [vmem:[#allocation2 + $0x88] sm:$0xff]
    %v82 = vld [vmem:[#allocation2 + $0x90] sm:$0xff]
    %v83 = vld [vmem:[#allocation2 + $0x98] sm:$0xff]
    %v84 = vld [vmem:[#allocation2 + $0xa0] sm:$0xff]
    %v85 = vld [vmem:[#allocation2 + $0xa8] sm:$0xff]
    %v86 = vld [vmem:[#allocation2 + $0xb0] sm:$0xff]
    %v87 = vld [vmem:[#allocation2 + $0xb8] sm:$0xff]
    %v88 = vld [vmem:[#allocation2 + $0xc0] sm:$0xff]
    %v89 = vld [vmem:[#allocation2 + $0xc8] sm:$0xff]
    %v90 = vld [vmem:[#allocation2 + $0xd0] sm:$0xff]
    %v91 = vld [vmem:[#allocation2 + $0xd8] sm:$0xff]
    %v92 = vld [vmem:[#allocation2 + $0xe0] sm:$0xff]
    %v93 = vld [vmem:[#allocation2 + $0xe8] sm:$0xff]
    %v94 = vld [vmem:[#allocation2 + $0xf0] sm:$0xff]
    %v95 = vld [vmem:[#allocation2 + $0xf8] sm:$0xff]
    %v96 = vld [vmem:[#allocation2 + $0x100] sm:$0xff]
    %v97 = vld [vmem:[#allocation2 + $0x108] sm:$0xff]
    %v98 = vld [vmem:[#allocation2 + $0x110] sm:$0xff]
    %v99 = vld [vmem:[#allocation2 + $0x118] sm:$0xff]
    %v100 = vld [vmem:[#allocation2 + $0x120] sm:$0xff]
    %v101 = vld [vmem:[#allocation2 + $0x128] sm:$0xff]
    %v102 = vld [vmem:[#allocation2 + $0x130] sm:$0xff]
    %v103 = vld [vmem:[#allocation2 + $0x138] sm:$0xff]
    %v104 = vld [vmem:[#allocation2 + $0x140] sm:$0xff]
    %v105 = vld [vmem:[#allocation2 + $0x148] sm:$0xff]
    %v106 = vld [vmem:[#allocation2 + $0x150] sm:$0xff]
    %v107 = vld [vmem:[#allocation2 + $0x158] sm:$0xff]
    %v108 = vld [vmem:[#allocation2 + $0x160] sm:$0xff]
    %v109 = vld [vmem:[#allocation2 + $0x168] sm:$0xff]
    %v110 = vld [vmem:[#allocation2 + $0x170] sm:$0xff]
    %v111 = vld [vmem:[#allocation2 + $0x178] sm:$0xff]
    %v112 = vld [vmem:[#allocation2 + $0x180] sm:$0xff]
    %v113 = vld [vmem:[#allocation2 + $0x188] sm:$0xff]
    %v114 = vld [vmem:[#allocation2 + $0x190] sm:$0xff]
    %v115 = vld [vmem:[#allocation2 + $0x198] sm:$0xff]
    %v116 = vld [vmem:[#allocation2 + $0x1a0] sm:$0xff]
    %v117 = vld [vmem:[#allocation2 + $0x1a8] sm:$0xff]
    %v118 = vld [vmem:[#allocation2 + $0x1b0] sm:$0xff]
    %v119 = vld [vmem:[#allocation2 + $0x1b8] sm:$0xff]
    %v120 = vld [vmem:[#allocation2 + $0x1c0] sm:$0xff]
    %v121 = vld [vmem:[#allocation2 + $0x1c8] sm:$0xff]
    %v122 = vld [vmem:[#allocation2 + $0x1d0] sm:$0xff]
    %v123 = vld [vmem:[#allocation2 + $0x1d8] sm:$0xff]
    %v124 = vld [vmem:[#allocation2 + $0x1e0] sm:$0xff]
    %v125 = vld [vmem:[#allocation2 + $0x1e8] sm:$0xff]
    %v126 = vld [vmem:[#allocation2 + $0x1f0] sm:$0xff]
    %v127 = vld [vmem:[#allocation2 + $0x1f8] sm:$0xff]
    %v128 = vld [vmem:[#allocation2 + $0x200] sm:$0xff]
    %v129 = vld [vmem:[#allocation2 + $0x208] sm:$0xff]
    %v130 = vld [vmem:[#allocation2 + $0x210] sm:$0xff]
    %v131 = vld [vmem:[#allocation2 + $0x218] sm:$0xff]
    %v132 = vld [vmem:[#allocation2 + $0x220] sm:$0xff]
    %v133 = vld [vmem:[#allocation2 + $0x228] sm:$0xff]
    %v134 = vld [vmem:[#allocation2 + $0x230] sm:$0xff]
    %v135 = vld [vmem:[#allocation2 + $0x238] sm:$0xff]
    %v136 = vld [vmem:[#allocation2 + $0x240] sm:$0xff]
    %v137 = vld [vmem:[#allocation2 + $0x248] sm:$0xff]
    %v138 = vld [vmem:[#allocation2 + $0x250] sm:$0xff]
    %v139 = vld [vmem:[#allocation2 + $0x258] sm:$0xff]
    %v140 = vld [vmem:[#allocation2 + $0x260] sm:$0xff]
    %v141 = vld [vmem:[#allocation2 + $0x268] sm:$0xff]
    %v142 = vld [vmem:[#allocation2 + $0x270] sm:$0xff]
    %v143 = vld [vmem:[#allocation2 + $0x278] sm:$0xff]
    %v144 = vld [vmem:[#allocation2 + $0x280] sm:$0xff]
    %v145 = vld [vmem:[#allocation2 + $0x288] sm:$0xff]
    %v146 = vld [vmem:[#allocation2 + $0x290] sm:$0xff]
    %v147 = vld [vmem:[#allocation2 + $0x298] sm:$0xff]
    %v148 = vld [vmem:[#allocation2 + $0x2a0] sm:$0xff]
    %v149 = vld [vmem:[#allocation2 + $0x2a8] sm:$0xff]
    %v150 = vld [vmem:[#allocation2 + $0x2b0] sm:$0xff]
    %v151 = vld [vmem:[#allocation2 + $0x2b8] sm:$0xff]
    %v152 = vld [vmem:[#allocation2 + $0x2c0] sm:$0xff]
    %v153 = vld [vmem:[#allocation2 + $0x2c8] sm:$0xff]
    %v154 = vld [vmem:[#allocation2 + $0x2d0] sm:$0xff]
    %v155 = vld [vmem:[#allocation2 + $0x2d8] sm:$0xff]
    %v156 = vld [vmem:[#allocation2 + $0x2e0] sm:$0xff]
    %v157 = vld [vmem:[#allocation2 + $0x2e8] sm:$0xff]
    %v158 = vld [vmem:[#allocation2 + $0x2f0] sm:$0xff]
    %v159 = vld [vmem:[#allocation2 + $0x2f8] sm:$0xff]
    %v160 = vld [vmem:[#allocation2 + $0x300] sm:$0xff]
    %v161 = vld [vmem:[#allocation2 + $0x308] sm:$0xff]
    %v162 = vld [vmem:[%s2] sm:$0x3]
    %v164 = vlaneseq
    %v165 = vshrl.u32 %v164, 7
    %v166 = vsub.s32 0, %v165
    %v167 = vrot.slane %v162, %v166
    %v168 = vlaneseq
    %v169 = vshrl.u32 %v168, 7
    %v170 = vsub.s32 1, %v169
    %v171 = vrot.slane %v162, %v170
    %v182 = vunpack.c.l.b16 %v56
    %v183 = vunpack.c.h.b16 %v56
    %v184 = vunpack.c.l.b16 %v57
    %v185 = vunpack.c.h.b16 %v57
    %v186 = vunpack.c.l.b16 %v58
    %v187 = vunpack.c.h.b16 %v58
    %v188 = vunpack.c.l.b16 %v59
    %v189 = vunpack.c.l.b16 %v60
    %v190 = vunpack.c.h.b16 %v60
    %v191 = vunpack.c.l.b16 %v61
    %v192 = vunpack.c.h.b16 %v61
    %v193 = vunpack.c.l.b16 %v62
    %v194 = vunpack.c.h.b16 %v62
    %v195 = vunpack.c.l.b16 %v63
    %v196 = vpack.c.b16 %v189, %v182
    %v197 = vpack.c.b16 %v190, %v183
    %v198 = vpack.c.b16 %v191, %v184
    %v199 = vpack.c.b16 %v192, %v185
    %v200 = vpack.c.b16 %v193, %v186
    %v201 = vpack.c.b16 %v194, %v187
    %v202 = vpack.c.b16 %v195, %v188
    %v307 = vunpack.c.l.b16 %v64
    %v308 = vunpack.c.h.b16 %v64
    %v309 = vunpack.c.l.b16 %v65
    %v310 = vunpack.c.h.b16 %v65
    %v311 = vunpack.c.l.b16 %v66
    %v312 = vunpack.c.h.b16 %v66
    %v313 = vunpack.c.l.b16 %v67
    %v314 = vunpack.c.h.b16 %v67
    %v315 = vunpack.c.l.b16 %v68
    %v316 = vunpack.c.h.b16 %v68
    %v317 = vunpack.c.l.b16 %v69
    %v318 = vunpack.c.h.b16 %v69
    %v319 = vunpack.c.l.b16 %v70
    %v320 = vunpack.c.h.b16 %v70
    %v321 = vunpack.c.l.b16 %v71
    %v322 = vunpack.c.h.b16 %v71
    %v323 = vunpack.c.l.b16 %v72
    %v324 = vunpack.c.h.b16 %v72
    %v325 = vunpack.c.l.b16 %v73
    %v326 = vunpack.c.h.b16 %v73
    %v327 = vunpack.c.l.b16 %v74
    %v328 = vunpack.c.h.b16 %v74
    %v329 = vunpack.c.l.b16 %v75
    %v330 = vunpack.c.h.b16 %v75
    %v331 = vunpack.c.l.b16 %v76
    %v332 = vunpack.c.h.b16 %v76
    %v333 = vunpack.c.l.b16 %v77
    %v334 = vunpack.c.h.b16 %v77
    %v335 = vunpack.c.l.b16 %v78
    %v336 = vunpack.c.h.b16 %v78
    %v337 = vunpack.c.l.b16 %v79
    %v338 = vunpack.c.h.b16 %v79
    %v339 = vunpack.c.l.b16 %v80
    %v340 = vunpack.c.h.b16 %v80
    %v341 = vunpack.c.l.b16 %v81
    %v342 = vunpack.c.h.b16 %v81
    %v343 = vunpack.c.l.b16 %v82
    %v344 = vunpack.c.h.b16 %v82
    %v345 = vunpack.c.l.b16 %v83
    %v346 = vunpack.c.h.b16 %v83
    %v347 = vunpack.c.l.b16 %v84
    %v348 = vunpack.c.h.b16 %v84
    %v349 = vunpack.c.l.b16 %v85
    %v350 = vunpack.c.h.b16 %v85
    %v351 = vunpack.c.l.b16 %v86
    %v352 = vunpack.c.h.b16 %v86
    %v353 = vunpack.c.l.b16 %v87
    %v354 = vunpack.c.h.b16 %v87
    %v355 = vunpack.c.l.b16 %v88
    %v356 = vunpack.c.h.b16 %v88
    %v357 = vunpack.c.l.b16 %v89
    %v358 = vunpack.c.h.b16 %v89
    %v359 = vunpack.c.l.b16 %v90
    %v360 = vunpack.c.h.b16 %v90
    %v361 = vunpack.c.l.b16 %v91
    %v362 = vunpack.c.h.b16 %v91
    %v363 = vunpack.c.l.b16 %v92
    %v364 = vunpack.c.h.b16 %v92
    %v365 = vunpack.c.l.b16 %v93
    %v366 = vunpack.c.h.b16 %v93
    %v367 = vunpack.c.l.b16 %v94
    %v368 = vunpack.c.h.b16 %v94
    %v369 = vunpack.c.l.b16 %v95
    %v370 = vunpack.c.h.b16 %v95
    %v371 = vunpack.c.l.b16 %v96
    %v372 = vunpack.c.h.b16 %v96
    %v373 = vunpack.c.l.b16 %v97
    %v374 = vunpack.c.h.b16 %v97
    %v375 = vunpack.c.l.b16 %v98
    %v376 = vunpack.c.h.b16 %v98
    %v377 = vunpack.c.l.b16 %v99
    %v378 = vunpack.c.h.b16 %v99
    %v379 = vunpack.c.l.b16 %v100
    %v380 = vunpack.c.h.b16 %v100
    %v381 = vunpack.c.l.b16 %v101
    %v382 = vunpack.c.h.b16 %v101
    %v383 = vunpack.c.l.b16 %v102
    %v384 = vunpack.c.h.b16 %v102
    %v385 = vunpack.c.l.b16 %v103
    %v386 = vunpack.c.h.b16 %v103
    %v387 = vunpack.c.l.b16 %v104
    %v388 = vunpack.c.h.b16 %v104
    %v389 = vunpack.c.l.b16 %v105
    %v390 = vunpack.c.h.b16 %v105
    %v391 = vunpack.c.l.b16 %v106
    %v392 = vunpack.c.h.b16 %v106
    %v393 = vunpack.c.l.b16 %v107
    %v394 = vunpack.c.h.b16 %v107
    %v395 = vunpack.c.l.b16 %v108
    %v396 = vunpack.c.h.b16 %v108
    %v397 = vunpack.c.l.b16 %v109
    %v398 = vunpack.c.h.b16 %v109
    %v399 = vunpack.c.l.b16 %v110
    %v400 = vunpack.c.h.b16 %v110
    %v401 = vunpack.c.l.b16 %v111
    %v402 = vunpack.c.h.b16 %v111
    %v403 = vunpack.c.l.b16 %v112
    %v404 = vunpack.c.h.b16 %v112
    %v405 = vunpack.c.l.b16 %v113
    %v406 = vunpack.c.h.b16 %v113
    %v407 = vunpack.c.l.b16 %v114
    %v408 = vunpack.c.h.b16 %v114
    %v409 = vunpack.c.l.b16 %v115
    %v410 = vunpack.c.h.b16 %v115
    %v411 = vunpack.c.l.b16 %v116
    %v412 = vunpack.c.h.b16 %v116
    %v413 = vunpack.c.l.b16 %v117
    %v414 = vunpack.c.h.b16 %v117
    %v415 = vunpack.c.l.b16 %v118
    %v416 = vunpack.c.h.b16 %v118
    %v417 = vunpack.c.l.b16 %v119
    %v418 = vunpack.c.h.b16 %v119
    %v419 = vunpack.c.l.b16 %v120
    %v420 = vunpack.c.h.b16 %v120
    %v421 = vunpack.c.l.b16 %v121
    %v422 = vunpack.c.h.b16 %v121
    %v423 = vunpack.c.l.b16 %v122
    %v424 = vunpack.c.h.b16 %v122
    %v425 = vunpack.c.l.b16 %v123
    %v426 = vunpack.c.h.b16 %v123
    %v427 = vunpack.c.l.b16 %v124
    %v428 = vunpack.c.h.b16 %v124
    %v429 = vunpack.c.l.b16 %v125
    %v430 = vunpack.c.h.b16 %v125
    %v431 = vunpack.c.l.b16 %v126
    %v432 = vunpack.c.h.b16 %v126
    %v433 = vunpack.c.l.b16 %v127
    %v434 = vunpack.c.h.b16 %v127
    %v435 = vunpack.c.l.b16 %v128
    %v436 = vunpack.c.h.b16 %v128
    %v437 = vunpack.c.l.b16 %v129
    %v438 = vunpack.c.h.b16 %v129
    %v439 = vunpack.c.l.b16 %v130
    %v440 = vunpack.c.h.b16 %v130
    %v441 = vunpack.c.l.b16 %v131
    %v442 = vunpack.c.h.b16 %v131
    %v443 = vunpack.c.l.b16 %v132
    %v444 = vunpack.c.h.b16 %v132
    %v445 = vunpack.c.l.b16 %v133
    %v446 = vunpack.c.h.b16 %v133
    %v447 = vunpack.c.l.b16 %v134
    %v448 = vunpack.c.h.b16 %v134
    %v449 = vunpack.c.l.b16 %v135
    %v450 = vunpack.c.h.b16 %v135
    %v451 = vunpack.c.l.b16 %v136
    %v452 = vunpack.c.h.b16 %v136
    %v453 = vunpack.c.l.b16 %v137
    %v454 = vunpack.c.h.b16 %v137
    %v455 = vunpack.c.l.b16 %v138
    %v456 = vunpack.c.h.b16 %v138
    %v457 = vunpack.c.l.b16 %v139
    %v458 = vunpack.c.h.b16 %v139
    %v459 = vunpack.c.l.b16 %v140
    %v460 = vunpack.c.h.b16 %v140
    %v461 = vunpack.c.l.b16 %v141
    %v462 = vunpack.c.h.b16 %v141
    %v463 = vunpack.c.l.b16 %v142
    %v464 = vunpack.c.h.b16 %v142
    %v465 = vunpack.c.l.b16 %v143
    %v466 = vunpack.c.h.b16 %v143
    %v467 = vunpack.c.l.b16 %v144
    %v468 = vunpack.c.h.b16 %v144
    %v469 = vunpack.c.l.b16 %v145
    %v470 = vunpack.c.h.b16 %v145
    %v471 = vunpack.c.l.b16 %v146
    %v472 = vunpack.c.h.b16 %v146
    %v473 = vunpack.c.l.b16 %v147
    %v474 = vunpack.c.h.b16 %v147
    %v475 = vunpack.c.l.b16 %v148
    %v476 = vunpack.c.h.b16 %v148
    %v477 = vunpack.c.l.b16 %v149
    %v478 = vunpack.c.h.b16 %v149
    %v479 = vunpack.c.l.b16 %v150
    %v480 = vunpack.c.h.b16 %v150
    %v481 = vunpack.c.l.b16 %v151
    %v482 = vunpack.c.h.b16 %v151
    %v483 = vunpack.c.l.b16 %v152
    %v484 = vunpack.c.h.b16 %v152
    %v485 = vunpack.c.l.b16 %v153
    %v486 = vunpack.c.h.b16 %v153
    %v487 = vunpack.c.l.b16 %v154
    %v488 = vunpack.c.h.b16 %v154
    %v489 = vunpack.c.l.b16 %v155
    %v490 = vunpack.c.h.b16 %v155
    %v491 = vunpack.c.l.b16 %v156
    %v492 = vunpack.c.h.b16 %v156
    %v493 = vunpack.c.l.b16 %v157
    %v494 = vunpack.c.h.b16 %v157
    %v495 = vunpack.c.l.b16 %v158
    %v496 = vunpack.c.h.b16 %v158
    %v497 = vunpack.c.l.b16 %v159
    %v498 = vunpack.c.h.b16 %v159
    %v499 = vunpack.c.l.b16 %v160
    %v500 = vunpack.c.h.b16 %v160
    %v501 = vunpack.c.l.b16 %v161
    %v502 = vunpack.c.h.b16 %v161
    %v503 = vpack.c.b16 %v309, %v307
    %v504 = vpack.c.b16 %v310, %v308
    %v505 = vpack.c.b16 %v313, %v311
    %v506 = vpack.c.b16 %v314, %v312
    %v507 = vpack.c.b16 %v317, %v315
    %v508 = vpack.c.b16 %v318, %v316
    %v509 = vpack.c.b16 %v321, %v319
    %v510 = vpack.c.b16 %v322, %v320
    %v511 = vpack.c.b16 %v325, %v323
    %v512 = vpack.c.b16 %v326, %v324
    %v513 = vpack.c.b16 %v329, %v327
    %v514 = vpack.c.b16 %v330, %v328
    %v515 = vpack.c.b16 %v333, %v331
    %v516 = vpack.c.b16 %v334, %v332
    %v517 = vpack.c.b16 %v337, %v335
    %v518 = vpack.c.b16 %v338, %v336
    %v519 = vpack.c.b16 %v341, %v339
    %v520 = vpack.c.b16 %v342, %v340
    %v521 = vpack.c.b16 %v345, %v343
    %v522 = vpack.c.b16 %v346, %v344
    %v523 = vpack.c.b16 %v349, %v347
    %v524 = vpack.c.b16 %v350, %v348
    %v525 = vpack.c.b16 %v353, %v351
    %v526 = vpack.c.b16 %v354, %v352
    %v527 = vpack.c.b16 %v357, %v355
    %v528 = vpack.c.b16 %v358, %v356
    %v529 = vpack.c.b16 %v361, %v359
    %v530 = vpack.c.b16 %v362, %v360
    %v531 = vpack.c.b16 %v365, %v363
    %v532 = vpack.c.b16 %v366, %v364
    %v533 = vpack.c.b16 %v369, %v367
    %v534 = vpack.c.b16 %v370, %v368
    %v535 = vpack.c.b16 %v373, %v371
    %v536 = vpack.c.b16 %v374, %v372
    %v537 = vpack.c.b16 %v377, %v375
    %v538 = vpack.c.b16 %v378, %v376
    %v539 = vpack.c.b16 %v381, %v379
    %v540 = vpack.c.b16 %v382, %v380
    %v541 = vpack.c.b16 %v385, %v383
    %v542 = vpack.c.b16 %v386, %v384
    %v543 = vpack.c.b16 %v389, %v387
    %v544 = vpack.c.b16 %v390, %v388
    %v545 = vpack.c.b16 %v393, %v391
    %v546 = vpack.c.b16 %v394, %v392
    %v547 = vpack.c.b16 %v397, %v395
    %v548 = vpack.c.b16 %v398, %v396
    %v549 = vpack.c.b16 %v401, %v399
    %v550 = vpack.c.b16 %v402, %v400
    %v551 = vpack.c.b16 %v405, %v403
    %v552 = vpack.c.b16 %v406, %v404
    %v553 = vpack.c.b16 %v409, %v407
    %v554 = vpack.c.b16 %v410, %v408
    %v555 = vpack.c.b16 %v413, %v411
    %v556 = vpack.c.b16 %v414, %v412
    %v557 = vpack.c.b16 %v417, %v415
    %v558 = vpack.c.b16 %v418, %v416
    %v559 = vpack.c.b16 %v421, %v419
    %v560 = vpack.c.b16 %v422, %v420
    %v561 = vpack.c.b16 %v425, %v423
    %v562 = vpack.c.b16 %v426, %v424
    %v563 = vpack.c.b16 %v429, %v427
    %v564 = vpack.c.b16 %v430, %v428
    %v565 = vpack.c.b16 %v433, %v431
    %v566 = vpack.c.b16 %v434, %v432
    %v567 = vpack.c.b16 %v437, %v435
    %v568 = vpack.c.b16 %v438, %v436
    %v569 = vpack.c.b16 %v441, %v439
    %v570 = vpack.c.b16 %v442, %v440
    %v571 = vpack.c.b16 %v445, %v443
    %v572 = vpack.c.b16 %v446, %v444
    %v573 = vpack.c.b16 %v449, %v447
    %v574 = vpack.c.b16 %v450, %v448
    %v575 = vpack.c.b16 %v453, %v451
    %v576 = vpack.c.b16 %v454, %v452
    %v577 = vpack.c.b16 %v457, %v455
    %v578 = vpack.c.b16 %v458, %v456
    %v579 = vpack.c.b16 %v461, %v459
    %v580 = vpack.c.b16 %v462, %v460
    %v581 = vpack.c.b16 %v465, %v463
    %v582 = vpack.c.b16 %v466, %v464
    %v583 = vpack.c.b16 %v469, %v467
    %v584 = vpack.c.b16 %v470, %v468
    %v585 = vpack.c.b16 %v473, %v471
    %v586 = vpack.c.b16 %v474, %v472
    %v587 = vpack.c.b16 %v477, %v475
    %v588 = vpack.c.b16 %v478, %v476
    %v589 = vpack.c.b16 %v481, %v479
    %v590 = vpack.c.b16 %v482, %v480
    %v591 = vpack.c.b16 %v485, %v483
    %v592 = vpack.c.b16 %v486, %v484
    %v593 = vpack.c.b16 %v489, %v487
    %v594 = vpack.c.b16 %v490, %v488
    %v595 = vpack.c.b16 %v493, %v491
    %v596 = vpack.c.b16 %v494, %v492
    %v597 = vpack.c.b16 %v497, %v495
    %v598 = vpack.c.b16 %v498, %v496
    %v599 = vpack.c.b16 %v501, %v499
    %v600 = vpack.c.b16 %v502, %v500
    %vm699 = vcmask 130048
    %v701 = vsel %vm699, %v202, 0
    %703 = vmatprep.subr.bf16.mxu0 %v518
    %704 = vmatpush1.bf16.msra.mxu0 %v517
    %705 = vmatprep.subr.bf16.mxu0 %v516
    %706 = vmatpush1.bf16.msra.mxu0 %v515
    %707 = vmatprep.subr.bf16.mxu0 %v514
    %708 = vmatpush1.bf16.msra.mxu0 %v513
    %709 = vmatprep.subr.bf16.mxu0 %v512
    %710 = vmatpush1.bf16.msra.mxu0 %v511
    %711 = vmatprep.subr.bf16.mxu0 %v510
    %712 = vmatpush1.bf16.msra.mxu0 %v509
    %713 = vmatprep.subr.bf16.mxu0 %v508
    %714 = vmatpush1.bf16.msra.mxu0 %v507
    %715 = vmatprep.subr.bf16.mxu0 %v506
    %716 = vmatpush1.bf16.msra.mxu0 %v505
    %717 = vmatprep.subr.bf16.mxu0 %v504
    %718 = vmatpush1.bf16.msra.mxu0 %v503
    %719 = vmatprep.subr.bf16.mxu0 %v534
    %720 = vmatpush2.bf16.msra.mxu0 %v533
    %721 = vmatprep.subr.bf16.mxu0 %v532
    %722 = vmatpush2.bf16.msra.mxu0 %v531
    %723 = vmatprep.subr.bf16.mxu0 %v530
    %724 = vmatpush2.bf16.msra.mxu0 %v529
    %725 = vmatprep.subr.bf16.mxu0 %v528
    %726 = vmatpush2.bf16.msra.mxu0 %v527
    %727 = vmatprep.subr.bf16.mxu0 %v526
    %728 = vmatpush2.bf16.msra.mxu0 %v525
    %729 = vmatprep.subr.bf16.mxu0 %v524
    %730 = vmatpush2.bf16.msra.mxu0 %v523
    %731 = vmatprep.subr.bf16.mxu0 %v522
    %732 = vmatpush2.bf16.msra.mxu0 %v521
    %733 = vmatprep.subr.bf16.mxu0 %v520
    %734 = vmatpush2.bf16.msra.mxu0 %v519
    %735 = vmatprep.mubr.bf16.mxu0 %v197
    %736 = vmatmul.mubr.bf16.gmra.mxu0 %v196
    %v737 = vpop.f32.mrf.mxu0
    %v738 = vadd.f32 %v167, %v737
    %v739 = vpop.f32.mrf.mxu0
    %v740 = vadd.f32 %v171, %v739
    %v741 = vpop.f32.mrf.mxu0
    %v742 = vadd.f32 %v167, %v741
    %v743 = vpop.f32.mrf.mxu0
    %v744 = vadd.f32 %v171, %v743
    %745 = vdwg.mxu0
    %746 = vmatprep.subr.bf16.mxu0 %v550
    %747 = vmatpush1.bf16.msra.mxu0 %v549
    %748 = vmatprep.subr.bf16.mxu0 %v548
    %749 = vmatpush1.bf16.msra.mxu0 %v547
    %750 = vmatprep.subr.bf16.mxu0 %v546
    %751 = vmatpush1.bf16.msra.mxu0 %v545
    %752 = vmatprep.subr.bf16.mxu0 %v544
    %753 = vmatpush1.bf16.msra.mxu0 %v543
    %754 = vmatprep.subr.bf16.mxu0 %v542
    %755 = vmatpush1.bf16.msra.mxu0 %v541
    %756 = vmatprep.subr.bf16.mxu0 %v540
    %757 = vmatpush1.bf16.msra.mxu0 %v539
    %758 = vmatprep.subr.bf16.mxu0 %v538
    %759 = vmatpush1.bf16.msra.mxu0 %v537
    %760 = vmatprep.subr.bf16.mxu0 %v536
    %761 = vmatpush1.bf16.msra.mxu0 %v535
    %762 = vmatprep.subr.bf16.mxu0 %v566
    %763 = vmatpush2.bf16.msra.mxu0 %v565
    %764 = vmatprep.subr.bf16.mxu0 %v564
    %765 = vmatpush2.bf16.msra.mxu0 %v563
    %766 = vmatprep.subr.bf16.mxu0 %v562
    %767 = vmatpush2.bf16.msra.mxu0 %v561
    %768 = vmatprep.subr.bf16.mxu0 %v560
    %769 = vmatpush2.bf16.msra.mxu0 %v559
    %770 = vmatprep.subr.bf16.mxu0 %v558
    %771 = vmatpush2.bf16.msra.mxu0 %v557
    %772 = vmatprep.subr.bf16.mxu0 %v556
    %773 = vmatpush2.bf16.msra.mxu0 %v555
    %774 = vmatprep.subr.bf16.mxu0 %v554
    %775 = vmatpush2.bf16.msra.mxu0 %v553
    %776 = vmatprep.subr.bf16.mxu0 %v552
    %777 = vmatpush2.bf16.msra.mxu0 %v551
    %778 = vmatprep.mubr.bf16.mxu0 %v199
    %779 = vmatmul.mubr.bf16.gmra.mxu0 %v198
    %v780 = vpop.f32.mrf.mxu0
    %v781 = vadd.f32 %v738, %v780
    %v782 = vpop.f32.mrf.mxu0
    %v783 = vadd.f32 %v740, %v782
    %v784 = vpop.f32.mrf.mxu0
    %v785 = vadd.f32 %v742, %v784
    %v786 = vpop.f32.mrf.mxu0
    %v787 = vadd.f32 %v744, %v786
    %788 = vdwg.mxu0
    %789 = vmatprep.subr.bf16.mxu0 %v582
    %790 = vmatpush1.bf16.msra.mxu0 %v581
    %791 = vmatprep.subr.bf16.mxu0 %v580
    %792 = vmatpush1.bf16.msra.mxu0 %v579
    %793 = vmatprep.subr.bf16.mxu0 %v578
    %794 = vmatpush1.bf16.msra.mxu0 %v577
    %795 = vmatprep.subr.bf16.mxu0 %v576
    %796 = vmatpush1.bf16.msra.mxu0 %v575
    %797 = vmatprep.subr.bf16.mxu0 %v574
    %798 = vmatpush1.bf16.msra.mxu0 %v573
    %799 = vmatprep.subr.bf16.mxu0 %v572
    %800 = vmatpush1.bf16.msra.mxu0 %v571
    %801 = vmatprep.subr.bf16.mxu0 %v570
    %802 = vmatpush1.bf16.msra.mxu0 %v569
    %803 = vmatprep.subr.bf16.mxu0 %v568
    %804 = vmatpush1.bf16.msra.mxu0 %v567
    %805 = vmatprep.subr.bf16.mxu0 %v598
    %806 = vmatpush2.bf16.msra.mxu0 %v597
    %807 = vmatprep.subr.bf16.mxu0 %v596
    %808 = vmatpush2.bf16.msra.mxu0 %v595
    %809 = vmatprep.subr.bf16.mxu0 %v594
    %810 = vmatpush2.bf16.msra.mxu0 %v593
    %811 = vmatprep.subr.bf16.mxu0 %v592
    %812 = vmatpush2.bf16.msra.mxu0 %v591
    %813 = vmatprep.subr.bf16.mxu0 %v590
    %814 = vmatpush2.bf16.msra.mxu0 %v589
    %815 = vmatprep.subr.bf16.mxu0 %v588
    %816 = vmatpush2.bf16.msra.mxu0 %v587
    %817 = vmatprep.subr.bf16.mxu0 %v586
    %818 = vmatpush2.bf16.msra.mxu0 %v585
    %819 = vmatprep.subr.bf16.mxu0 %v584
    %820 = vmatpush2.bf16.msra.mxu0 %v583
    %821 = vmatprep.mubr.bf16.mxu0 %v201
    %822 = vmatmul.mubr.bf16.gmra.mxu0 %v200
    %v823 = vpop.f32.mrf.mxu0
    %v824 = vadd.f32 %v781, %v823
    %v825 = vpop.f32.mrf.mxu0
    %v826 = vadd.f32 %v783, %v825
    %v827 = vpop.f32.mrf.mxu0
    %v828 = vadd.f32 %v785, %v827
    %v829 = vpop.f32.mrf.mxu0
    %v830 = vadd.f32 %v787, %v829
    %831 = vdwg.mxu0
    %832 = vmatprep.subr.bf16.mxu0 0
    %833 = vmatpush1.bf16.msra.mxu0 0
    %834 = vmatprep.subr.bf16.mxu0 0
    %835 = vmatpush1.bf16.msra.mxu0 0
    %836 = vmatprep.subr.bf16.mxu0 0
    %837 = vmatpush1.bf16.msra.mxu0 0
    %838 = vmatprep.subr.bf16.mxu0 0
    %839 = vmatpush1.bf16.msra.mxu0 0
    %840 = vmatprep.subr.bf16.mxu0 0
    %841 = vmatpush1.bf16.msra.mxu0 0
    %842 = vmatprep.subr.bf16.mxu0 0
    %843 = vmatpush1.bf16.msra.mxu0 0
    %844 = vmatprep.subr.bf16.mxu0 0
    %845 = vmatpush1.bf16.msra.mxu0 0
    %846 = vmatprep.subr.bf16.mxu0 %v600
    %847 = vmatpush1.bf16.msra.mxu0 %v599
    %848 = vmatprep.subr.bf16.mxu0 0
    %849 = vmatpush2.bf16.msra.mxu0 0
    %850 = vmatprep.subr.bf16.mxu0 0
    %851 = vmatpush2.bf16.msra.mxu0 0
    %852 = vmatprep.subr.bf16.mxu0 0
    %853 = vmatpush2.bf16.msra.mxu0 0
    %854 = vmatprep.subr.bf16.mxu0 0
    %855 = vmatpush2.bf16.msra.mxu0 0
    %856 = vmatprep.subr.bf16.mxu0 0
    %857 = vmatpush2.bf16.msra.mxu0 0
    %858 = vmatprep.subr.bf16.mxu0 0
    %859 = vmatpush2.bf16.msra.mxu0 0
    %860 = vmatprep.subr.bf16.mxu0 0
    %861 = vmatpush2.bf16.msra.mxu0 0
    %862 = vmatprep.subr.bf16.mxu0 0
    %863 = vmatpush2.bf16.msra.mxu0 0
    %864 = vmatprep.mubr.bf16.mxu0 0
    %865 = vmatmul.mubr.bf16.gmra.mxu0 %v701
    %v866 = vpop.f32.mrf.mxu0
    %v867 = vadd.f32 %v824, %v866
    %v868 = vpop.f32.mrf.mxu0
    %v869 = vadd.f32 %v826, %v868
    %v870 = vpop.f32.mrf.mxu0
    %v871 = vadd.f32 %v828, %v870
    %v872 = vpop.f32.mrf.mxu0
    %v873 = vadd.f32 %v830, %v872
    %874 = vdwg.mxu0
    %v875 = vmax.f32 %v867, 0.0
    %v876 = vmax.f32 %v869, 0.0
    %v877 = vmax.f32 %v871, 0.0
    %v878 = vmax.f32 %v873, 0.0
    %v879 = vpack.c.bf16 %v877, %v875
    %v880 = vpack.c.bf16 %v878, %v876
    %v881 = vld [vmem:[#allocation5] sm:$0xf]
    %v882 = vld [vmem:[#allocation5 + $0x4] sm:$0xf]
    %v883 = vld [vmem:[#allocation5 + $0x8] sm:$0xf]
    %v884 = vld [vmem:[#allocation5 + $0xc] sm:$0xf]
    %v885 = vld [vmem:[#allocation5 + $0x10] sm:$0xf]
    %v886 = vld [vmem:[#allocation5 + $0x14] sm:$0xf]
    %v887 = vld [vmem:[#allocation5 + $0x18] sm:$0xf]
    %v888 = vld [vmem:[#allocation5 + $0x1c] sm:$0xf]
    %v889 = vld [vmem:[#allocation5 + $0x20] sm:$0xf]
    %v890 = vld [vmem:[#allocation5 + $0x24] sm:$0xf]
    %v891 = vld [vmem:[#allocation5 + $0x28] sm:$0xf]
    %v892 = vld [vmem:[#allocation5 + $0x2c] sm:$0xf]
    %v893 = vld [vmem:[#allocation5 + $0x30] sm:$0xf]
    %v894 = vld [vmem:[#allocation5 + $0x34] sm:$0xf]
    %v895 = vld [vmem:[#allocation5 + $0x38] sm:$0xf]
    %v896 = vld [vmem:[#allocation5 + $0x3c] sm:$0xf]
    %v897 = vld [vmem:[#allocation5 + $0x40] sm:$0xf]
    %v898 = vld [vmem:[#allocation5 + $0x44] sm:$0xf]
    %v899 = vld [vmem:[#allocation5 + $0x48] sm:$0xf]
    %v900 = vld [vmem:[#allocation5 + $0x4c] sm:$0xf]
    %v901 = vld [vmem:[#allocation5 + $0x50] sm:$0xf]
    %v902 = vld [vmem:[#allocation5 + $0x54] sm:$0xf]
    %v903 = vld [vmem:[#allocation5 + $0x58] sm:$0xf]
    %v904 = vld [vmem:[#allocation5 + $0x5c] sm:$0xf]
    %v905 = vld [vmem:[#allocation5 + $0x60] sm:$0xf]
    %v906 = vld [vmem:[#allocation5 + $0x64] sm:$0xf]
    %v907 = vld [vmem:[#allocation5 + $0x68] sm:$0xf]
    %v908 = vld [vmem:[#allocation5 + $0x6c] sm:$0xf]
    %v909 = vld [vmem:[#allocation5 + $0x70] sm:$0xf]
    %v910 = vld [vmem:[#allocation5 + $0x74] sm:$0xf]
    %v911 = vld [vmem:[#allocation5 + $0x78] sm:$0xf]
    %v912 = vld [vmem:[#allocation5 + $0x7c] sm:$0xf]
    %v913 = vld [vmem:[%s4] sm:$0x1]
    %v915 = vlaneseq
    %v916 = vshrl.u32 %v915, 7
    %v917 = vsub.s32 0, %v916
    %v918 = vrot.slane %v913, %v917
    %v952 = vunpack.c.l.b16 %v881
    %v953 = vunpack.c.l.b16 %v882
    %v954 = vunpack.c.l.b16 %v883
    %v955 = vunpack.c.l.b16 %v884
    %v956 = vunpack.c.l.b16 %v885
    %v957 = vunpack.c.l.b16 %v886
    %v958 = vunpack.c.l.b16 %v887
    %v959 = vunpack.c.l.b16 %v888
    %v960 = vunpack.c.l.b16 %v889
    %v961 = vunpack.c.l.b16 %v890
    %v962 = vunpack.c.l.b16 %v891
    %v963 = vunpack.c.l.b16 %v892
    %v964 = vunpack.c.l.b16 %v893
    %v965 = vunpack.c.l.b16 %v894
    %v966 = vunpack.c.l.b16 %v895
    %v967 = vunpack.c.l.b16 %v896
    %v968 = vunpack.c.l.b16 %v897
    %v969 = vunpack.c.l.b16 %v898
    %v970 = vunpack.c.l.b16 %v899
    %v971 = vunpack.c.l.b16 %v900
    %v972 = vunpack.c.l.b16 %v901
    %v973 = vunpack.c.l.b16 %v902
    %v974 = vunpack.c.l.b16 %v903
    %v975 = vunpack.c.l.b16 %v904
    %v976 = vunpack.c.l.b16 %v905
    %v977 = vunpack.c.l.b16 %v906
    %v978 = vunpack.c.l.b16 %v907
    %v979 = vunpack.c.l.b16 %v908
    %v980 = vunpack.c.l.b16 %v909
    %v981 = vunpack.c.l.b16 %v910
    %v982 = vunpack.c.l.b16 %v911
    %v983 = vunpack.c.l.b16 %v912
    %v984 = vpack.c.b16 %v953, %v952
    %v985 = vpack.c.b16 %v955, %v954
    %v986 = vpack.c.b16 %v957, %v956
    %v987 = vpack.c.b16 %v959, %v958
    %v988 = vpack.c.b16 %v961, %v960
    %v989 = vpack.c.b16 %v963, %v962
    %v990 = vpack.c.b16 %v965, %v964
    %v991 = vpack.c.b16 %v967, %v966
    %v992 = vpack.c.b16 %v969, %v968
    %v993 = vpack.c.b16 %v971, %v970
    %v994 = vpack.c.b16 %v973, %v972
    %v995 = vpack.c.b16 %v975, %v974
    %v996 = vpack.c.b16 %v977, %v976
    %v997 = vpack.c.b16 %v979, %v978
    %v998 = vpack.c.b16 %v981, %v980
    %v999 = vpack.c.b16 %v983, %v982
    %1016 = vmatprep.subr.bf16.mxu0 0
    %1017 = vmatpush1.bf16.msra.mxu0 %v991
    %1018 = vmatprep.subr.bf16.mxu0 0
    %1019 = vmatpush1.bf16.msra.mxu0 %v990
    %1020 = vmatprep.subr.bf16.mxu0 0
    %1021 = vmatpush1.bf16.msra.mxu0 %v989
    %1022 = vmatprep.subr.bf16.mxu0 0
    %1023 = vmatpush1.bf16.msra.mxu0 %v988
    %1024 = vmatprep.subr.bf16.mxu0 0
    %1025 = vmatpush1.bf16.msra.mxu0 %v987
    %1026 = vmatprep.subr.bf16.mxu0 0
    %1027 = vmatpush1.bf16.msra.mxu0 %v986
    %1028 = vmatprep.subr.bf16.mxu0 0
    %1029 = vmatpush1.bf16.msra.mxu0 %v985
    %1030 = vmatprep.subr.bf16.mxu0 0
    %1031 = vmatpush1.bf16.msra.mxu0 %v984
    %1032 = vmatprep.subr.bf16.mxu0 0
    %1033 = vmatpush2.bf16.msra.mxu0 %v999
    %1034 = vmatprep.subr.bf16.mxu0 0
    %1035 = vmatpush2.bf16.msra.mxu0 %v998
    %1036 = vmatprep.subr.bf16.mxu0 0
    %1037 = vmatpush2.bf16.msra.mxu0 %v997
    %1038 = vmatprep.subr.bf16.mxu0 0
    %1039 = vmatpush2.bf16.msra.mxu0 %v996
    %1040 = vmatprep.subr.bf16.mxu0 0
    %1041 = vmatpush2.bf16.msra.mxu0 %v995
    %1042 = vmatprep.subr.bf16.mxu0 0
    %1043 = vmatpush2.bf16.msra.mxu0 %v994
    %1044 = vmatprep.subr.bf16.mxu0 0
    %1045 = vmatpush2.bf16.msra.mxu0 %v993
    %1046 = vmatprep.subr.bf16.mxu0 0
    %1047 = vmatpush2.bf16.msra.mxu0 %v992
    %1048 = vmatprep.mubr.bf16.mxu0 %v880
    %1049 = vmatmul.mubr.bf16.gmra.mxu0 %v879
    %v1050 = vpop.f32.mrf.mxu0
    %v1051 = vadd.f32 %v918, %v1050
    %v1052 = vpop.f32.mrf.mxu0
    %v1053 = vpop.f32.mrf.mxu0
    %v1054 = vadd.f32 %v918, %v1053
    %v1055 = vpop.f32.mrf.mxu0
    %1056 = vdwg.mxu0
    %v1057 = vmax.f32 %v1051, 0.0
    %v1058 = vmax.f32 %v1054, 0.0
    %v1059 = vpack.c.bf16 %v1058, %v1057
    %v1060 = vld [vmem:[%s5] sm:$0xf]
    %v1061 = vld [vmem:[%s5 + $0x4] sm:$0xf]
    %v1062 = vld [vmem:[%s5 + $0x8] sm:$0xf]
    %v1063 = vld [vmem:[%s5 + $0xc] sm:$0xf]
    %v1064 = vld [vmem:[%s5 + $0x10] sm:$0xf]
    %v1065 = vld [vmem:[%s5 + $0x14] sm:$0xf]
    %v1066 = vld [vmem:[%s5 + $0x18] sm:$0xf]
    %v1067 = vld [vmem:[%s5 + $0x1c] sm:$0xf]
    %v1068 = vld [vmem:[%s5 + $0x20] sm:$0xf]
    %v1069 = vld [vmem:[%s5 + $0x24] sm:$0xf]
    %v1070 = vld [vmem:[%s5 + $0x28] sm:$0xf]
    %v1071 = vld [vmem:[%s5 + $0x2c] sm:$0xf]
    %v1072 = vld [vmem:[%s5 + $0x30] sm:$0xf]
    %v1073 = vld [vmem:[%s5 + $0x34] sm:$0xf]
    %v1074 = vld [vmem:[%s5 + $0x38] sm:$0xf]
    %v1075 = vld [vmem:[%s5 + $0x3c] sm:$0xf]
    %v1076 = vld [vmem:[%s6] sm:$0x1]
    %v1078 = vlaneseq
    %v1079 = vshrl.u32 %v1078, 7
    %v1080 = vsub.s32 0, %v1079
    %v1081 = vrot.slane %v1076, %v1080
    %v1099 = vunpack.c.l.b16 %v1060
    %v1100 = vunpack.c.l.b16 %v1061
    %v1101 = vunpack.c.l.b16 %v1062
    %v1102 = vunpack.c.l.b16 %v1063
    %v1103 = vunpack.c.l.b16 %v1064
    %v1104 = vunpack.c.l.b16 %v1065
    %v1105 = vunpack.c.l.b16 %v1066
    %v1106 = vunpack.c.l.b16 %v1067
    %v1107 = vunpack.c.l.b16 %v1068
    %v1108 = vunpack.c.l.b16 %v1069
    %v1109 = vunpack.c.l.b16 %v1070
    %v1110 = vunpack.c.l.b16 %v1071
    %v1111 = vunpack.c.l.b16 %v1072
    %v1112 = vunpack.c.l.b16 %v1073
    %v1113 = vunpack.c.l.b16 %v1074
    %v1114 = vunpack.c.l.b16 %v1075
    %v1115 = vpack.c.b16 %v1100, %v1099
    %v1116 = vpack.c.b16 %v1102, %v1101
    %v1117 = vpack.c.b16 %v1104, %v1103
    %v1118 = vpack.c.b16 %v1106, %v1105
    %v1119 = vpack.c.b16 %v1108, %v1107
    %v1120 = vpack.c.b16 %v1110, %v1109
    %v1121 = vpack.c.b16 %v1112, %v1111
    %v1122 = vpack.c.b16 %v1114, %v1113
    %1131 = vmatprep.subr.bf16.mxu0 0
    %1132 = vmatpush1.bf16.msra.mxu0 %v1122
    %1133 = vmatprep.subr.bf16.mxu0 0
    %1134 = vmatpush1.bf16.msra.mxu0 %v1121
    %1135 = vmatprep.subr.bf16.mxu0 0
    %1136 = vmatpush1.bf16.msra.mxu0 %v1120
    %1137 = vmatprep.subr.bf16.mxu0 0
    %1138 = vmatpush1.bf16.msra.mxu0 %v1119
    %1139 = vmatprep.subr.bf16.mxu0 0
    %1140 = vmatpush1.bf16.msra.mxu0 %v1118
    %1141 = vmatprep.subr.bf16.mxu0 0
    %1142 = vmatpush1.bf16.msra.mxu0 %v1117
    %1143 = vmatprep.subr.bf16.mxu0 0
    %1144 = vmatpush1.bf16.msra.mxu0 %v1116
    %1145 = vmatprep.subr.bf16.mxu0 0
    %1146 = vmatpush1.bf16.msra.mxu0 %v1115
    %1147 = vmatprep.subr.bf16.mxu0 0
    %1148 = vmatpush2.bf16.msra.mxu0 0
    %1149 = vmatprep.subr.bf16.mxu0 0
    %1150 = vmatpush2.bf16.msra.mxu0 0
    %1151 = vmatprep.subr.bf16.mxu0 0
    %1152 = vmatpush2.bf16.msra.mxu0 0
    %1153 = vmatprep.subr.bf16.mxu0 0
    %1154 = vmatpush2.bf16.msra.mxu0 0
    %1155 = vmatprep.subr.bf16.mxu0 0
    %1156 = vmatpush2.bf16.msra.mxu0 0
    %1157 = vmatprep.subr.bf16.mxu0 0
    %1158 = vmatpush2.bf16.msra.mxu0 0
    %1159 = vmatprep.subr.bf16.mxu0 0
    %1160 = vmatpush2.bf16.msra.mxu0 0
    %1161 = vmatprep.subr.bf16.mxu0 0
    %1162 = vmatpush2.bf16.msra.mxu0 0
    %1163 = vmatprep.mubr.bf16.mxu0 0
    %1164 = vmatmul.mubr.bf16.gmra.mxu0 %v1059
    %v1165 = vpop.f32.mrf.mxu0
    %v1166 = vadd.f32 %v1081, %v1165
    %v1167 = vpop.f32.mrf.mxu0
    %v1168 = vpop.f32.mrf.mxu0
    %v1169 = vadd.f32 %v1081, %v1168
    %v1170 = vpop.f32.mrf.mxu0
    %1171 = vdwg.mxu0
    %vm1172 = vcmask 80896
    %1173 = vst.msk [vmem:[#allocation7] sm:$0xff] %vm1172, %v1166
    %1174 = vst.msk [vmem:[#allocation7 + $0x8] sm:$0xff] %vm1172, %v1169
    // Predicated region
    $region38: #{tpu_custom_call.1} parent=1 // pred_check
      _
    $region39: #{tpu_custom_call.1} parent=1 // pred_check_branch
      %1176 = sbr.rel (0) target = $region41
    $region40: #{tpu_custom_call.1} parent=1 // pred_region
      %s1178 = ssub.s32 256, 256
      %1179 = vsyncadd [#allocation4], %s1178
      %s1180 = sshll.u32 [#allocation7], 4
      %s1181 = int_to_ptr.vmem [resolvable:$true] %s1180
      %1186 = dma.vmem_to_hbm [thread:$0]  %s1181, 256, %s7, [#allocation4], 128, 128, 8
    $region41: #{tpu_custom_call.1} parent=1 // pred_fallthru
      _
    // Predicated region
    $region42: #{tpu_custom_call.1} parent=1 // pred_check
      _
    $region43: #{tpu_custom_call.1} parent=1 // pred_check_branch
      %1188 = sbr.rel (0) target = $region45
    $region44: #{tpu_custom_call.1} parent=1 // pred_region
      %1189 = dma.done [#allocation4], 256
    $region45: #{tpu_custom_call.1} parent=1 // pred_fallthru
      _
    %1190 = vsyncpa [#allocation3], 1
    %1191 = vsyncpa [#allocation6], 1
    %1192 = vsyncpa [#allocation4], 1

</llo_original>
